<compile_context>
chip_gen: v7x
topology: tpu7x:2x2x1
jax: 0.10.0
libtpu: 0.0.40
codegen_flags: <defaults>
</compile_context>

<pallas_src>
import functools

import jax
import jax.numpy as jnp
from jax.experimental import pallas as pl
from jax.experimental.pallas import tpu as pltpu


def _cdiv(a, b):
    return -(-a // b)


def _round_up(x, m):
    return _cdiv(x, m) * m


def _focal_loss_kernel(pred_ref, lab_ref, out_ref, *, alpha, gamma, num_classes,
                       n_valid, tile_rows, tiles_per_shard):
    s = pl.program_id(0)          # shard axis (parallel; megacore on v7x)
    i = pl.program_id(1)          # batch-tile axis within shard (reduction)
    blk = s * tiles_per_shard + i
    tile_n = tile_rows * 128

    # Output block is resident in VMEM across the reduction axis: init once.
    @pl.when(i == 0)
    def _():
        out_ref[...] = jnp.zeros_like(out_ref)

    # Unrolled class dimension: each class is a (tile_rows, 128) slab with the
    # batch on (sublane, lane) -> all class "reductions" are VPU elementwise.
    xs = [pred_ref[c].astype(jnp.float32) for c in range(num_classes)]
    lab = lab_ref[...].astype(jnp.int32)                     # int8 on the wire

    m = xs[0]
    for c in range(1, num_classes):
        m = jnp.maximum(m, xs[c])
    es = [jnp.exp(x - m) for x in xs]
    denom = es[0]
    for c in range(1, num_classes):
        denom = denom + es[c]

    # Gather the labelled class with a select chain.
    e_t = es[num_classes - 1]
    for c in range(num_classes - 2, -1, -1):
        e_t = jnp.where(lab == c, es[c], e_t)

    # alpha gather with trace-time constants; collapsed to one select for the
    # standard [alpha, 1-alpha, 1-alpha, ...] pattern.
    if num_classes >= 2 and all(a == alpha[1] for a in alpha[1:]):
        a_t = jnp.where(lab == 0, jnp.float32(alpha[0]), jnp.float32(alpha[1]))
    else:
        a_t = jnp.full(lab.shape, jnp.float32(alpha[num_classes - 1]), jnp.float32)
        for c in range(num_classes - 2, -1, -1):
            a_t = jnp.where(lab == c, jnp.float32(alpha[c]), a_t)

    # Clamp only the gathered probability (equivalent to clamping all probs
    # and then gathering); one EUP log per row. Keep the exact divide.
    p_t = jnp.clip(e_t / denom, 0.0001, 1.0)
    logp_t = jnp.log(p_t)

    q = 1.0 - p_t
    if float(gamma) == float(int(gamma)) and gamma >= 0:
        g = int(gamma)
        w = jnp.ones_like(q) if g == 0 else q
        for _ in range(max(0, g - 1)):                        # gamma=2 -> q*q
            w = w * q
    else:
        # TODO(synk): non-integer gamma falls back to pow (exp+log on the EUP).
        w = jnp.power(q, jnp.float32(gamma))

    loss = -(a_t * w * logp_t)                                # (tile_rows, 128)

    def fold8(x):
        # Fold (tile_rows, 128) down to a single (8, 128) vreg with free
        # sublane-block reshapes + VPU adds.
        return jnp.sum(x.reshape(tile_rows // 8, 8, 128), axis=0)

    # Only the tile that crosses the valid-row boundary pays for the mask.
    is_ragged = (blk + 1) * tile_n > n_valid

    @pl.when(jnp.logical_not(is_ragged))
    def _():
        out_ref[0, :, :] += fold8(loss)

    @pl.when(is_ragged)
    def _():
        row = (jax.lax.broadcasted_iota(jnp.int32, loss.shape, 0) * 128
               + jax.lax.broadcasted_iota(jnp.int32, loss.shape, 1))
        global_row = blk * tile_n + row
        out_ref[0, :, :] += fold8(jnp.where(global_row < n_valid, loss, 0.0))


def focal_loss_pallas(predict, labels, alpha, *, gamma=2.0, size_average=True,
                      num_shards=1, max_tile_rows=2048,
                      vmem_limit_bytes=48 * 1024 * 1024):
    """predict: [..., C] float, labels: [N] int, alpha: length-C weights -> scalar f32.

    num_shards: set to 2 on v7x (megacore) to split batch tiles across the two
    TensorCores; keep 1 on single-TC v5e/v6e.
    """
    predict = predict.reshape(-1, predict.shape[-1])
    N, C = predict.shape

    # alpha is a fixed module parameter -> bake as trace-time constants.
    alpha_t = tuple(float(a) for a in
                    jax.device_get(jnp.asarray(alpha, jnp.float32)).reshape(-1))
    assert len(alpha_t) == C, "alpha length must match class count"
    assert C <= 127, "int8 label path requires num_classes <= 127"

    # Adaptive tiling: biggest tile (<= max_tile_rows*128 rows) with padding
    # waste bounded to < 32 row-groups per tile.
    rows_needed = max(1, _cdiv(N, 128))                  # 128-row groups
    num_shards = max(1, min(int(num_shards), _cdiv(rows_needed, 32)))
    tiles_per_shard = max(1, _cdiv(rows_needed, num_shards * max_tile_rows))
    tile_rows = _round_up(_cdiv(rows_needed, num_shards * tiles_per_shard), 32)
    rows_pad = num_shards * tiles_per_shard * tile_rows
    n_pad = rows_pad * 128

    labels_i = labels.reshape(-1).astype(jnp.int8)       # 4x smaller label stream
    if n_pad != N:
        predict = jnp.pad(predict, ((0, n_pad - N), (0, 0)))
        labels_i = jnp.pad(labels_i, (0, n_pad - N))

    # Lane-dense layout: batch on (sublane, lane), tiny class dim unrolled.
    # Predict keeps its source dtype on the wire (bf16 stays bf16; cast to f32
    # happens inside the kernel after the DMA).
    # TODO(synk): this transpose is the one remaining extra HBM pass; accept a
    # producer-side [C, N] layout to remove it entirely.
    pred3 = jnp.transpose(predict, (1, 0)).reshape(C, rows_pad, 128)
    lab2 = labels_i.reshape(rows_pad, 128)

    kernel = functools.partial(
        _focal_loss_kernel, alpha=alpha_t, gamma=float(gamma), num_classes=C,
        n_valid=N, tile_rows=tile_rows, tiles_per_shard=tiles_per_shard)

    partials = pl.pallas_call(
        kernel,
        out_shape=jax.ShapeDtypeStruct((num_shards, 8, 128), jnp.float32),
        grid_spec=pltpu.PrefetchScalarGridSpec(
            num_scalar_prefetch=0,
            grid=(num_shards, tiles_per_shard),
            in_specs=[
                pl.BlockSpec((C, tile_rows, 128),
                             lambda s, i: (0, s * tiles_per_shard + i, 0)),
                pl.BlockSpec((tile_rows, 128),
                             lambda s, i: (s * tiles_per_shard + i, 0)),
            ],
            out_specs=pl.BlockSpec((1, 8, 128), lambda s, i: (s, 0, 0)),
        ),
        compiler_params=pltpu.CompilerParams(
            dimension_semantics=("parallel", "arbitrary"),
            vmem_limit_bytes=vmem_limit_bytes),
    )(pred3, lab2)

    total = jnp.sum(partials)        # tiny (num_shards, 8, 128) reduce in XLA
    if size_average:
        return total / jnp.float32(N)
    return total


def focal_loss_ref(predict, labels, alpha_vec, gamma=2.0, size_average=True):
    predict = predict.reshape(-1, predict.shape[-1]).astype(jnp.float32)
    p = jax.nn.softmax(predict, axis=1)
    p = jnp.clip(p, 0.0001, 1.0)
    logp = jnp.log(p)
    idx = labels.astype(jnp.int32)
    p_t = jnp.take_along_axis(p, idx[:, None], axis=1)[:, 0]
    logp_t = jnp.take_along_axis(logp, idx[:, None], axis=1)[:, 0]
    a_t = alpha_vec[idx]
    loss = -a_t * (1.0 - p_t) ** gamma * logp_t
    return jnp.mean(loss) if size_average else jnp.sum(loss)


if __name__ == "__main__":
    num_classes = 3
    batch = 8
    alpha_scalar = 0.25
    gamma = 2.0

    # Mirrors the module's __init__: alpha = [alpha, 1-alpha, 1-alpha, ...]
    alpha_vec = jnp.concatenate([
        jnp.array([alpha_scalar], dtype=jnp.float32),
        jnp.full((num_classes - 1,), 1.0 - alpha_scalar, dtype=jnp.float32),
    ])

    key = jax.random.PRNGKey(0)
    k1, k2 = jax.random.split(key)
    predict = jax.random.normal(k1, (batch, num_classes), dtype=jnp.float32)
    labels = jax.random.randint(k2, (batch,), 0, num_classes, dtype=jnp.int32)

    loss = focal_loss_pallas(predict, labels, alpha_vec, gamma=gamma,
                             size_average=True)
    loss = jax.block_until_ready(loss)

    ref = focal_loss_ref(predict, labels, alpha_vec, gamma=gamma,
                         size_average=True)
    assert jnp.allclose(loss, ref, rtol=1e-5, atol=1e-6), (loss, ref)

    print("KERNEL_OK")
</pallas_src>

<mosaic_0001>
module attributes {stable_mosaic.version = 11 : i64} {
  func.func @_focal_loss_kernel(%arg0: i32, %arg1: i32, %arg2: memref<3x32x128xf32, #tpu.memory_space<vmem>>, %arg3: memref<32x128xi8, #tpu.memory_space<vmem>>, %arg4: memref<1x8x128xf32, #tpu.memory_space<vmem>>) attributes {dimension_semantics = [#tpu.dimension_semantics<parallel>, #tpu.dimension_semantics<arbitrary>], iteration_bounds = array<i64: 1, 1>, scalar_prefetch = 0 : i64, scratch_operands = 0 : i64, tpu.core_type = #tpu.core_type<tc>, window_params = [{transform_indices = @transform_0, window_bounds = array<i64: 3, 32, 128>}, {transform_indices = @transform_1, window_bounds = array<i64: 32, 128>}, {transform_indices = @transform_2, window_bounds = array<i64: 1, 8, 128>}]} {
    %c1_i32 = arith.constant 1 : i32
    %0 = arith.muli %arg0, %c1_i32 : i32
    %1 = arith.addi %0, %arg1 : i32
    %c0_i32 = arith.constant 0 : i32
    %2 = arith.cmpi eq, %arg1, %c0_i32 : i32
    %3 = arith.extui %2 : i1 to i32
    %c0_i32_0 = arith.constant 0 : i32
    %4 = arith.cmpi ne, %3, %c0_i32_0 : i32
    scf.if %4 {
      %cst_20 = arith.constant 0.000000e+00 : f32
      %55 = vector.broadcast %cst_20 : f32 to vector<1x8x128xf32>
      %c0_21 = arith.constant 0 : index
      %c0_22 = arith.constant 0 : index
      %c0_23 = arith.constant 0 : index
      %56 = vector.load %arg4[%c0_21, %c0_22, %c0_23] : memref<1x8x128xf32, #tpu.memory_space<vmem>>, vector<1x8x128xf32>
      tpu.vector_store %arg4[%c0_21, %c0_22, %c0_23], %55 {strides = array<i32>} : memref<1x8x128xf32, #tpu.memory_space<vmem>>, vector<1x8x128xf32>,
    } else {
    }
    %c0 = arith.constant 0 : index
    %c0_1 = arith.constant 0 : index
    %c0_2 = arith.constant 0 : index
    %5 = vector.load %arg2[%c0, %c0_1, %c0_2] : memref<3x32x128xf32, #tpu.memory_space<vmem>>, vector<1x32x128xf32>
    %6 = vector.shape_cast %5 : vector<1x32x128xf32> to vector<32x128xf32>
    %c1 = arith.constant 1 : index
    %c0_3 = arith.constant 0 : index
    %c0_4 = arith.constant 0 : index
    %7 = vector.load %arg2[%c1, %c0_3, %c0_4] : memref<3x32x128xf32, #tpu.memory_space<vmem>>, vector<1x32x128xf32>
    %8 = vector.shape_cast %7 : vector<1x32x128xf32> to vector<32x128xf32>
    %c2 = arith.constant 2 : index
    %c0_5 = arith.constant 0 : index
    %c0_6 = arith.constant 0 : index
    %9 = vector.load %arg2[%c2, %c0_5, %c0_6] : memref<3x32x128xf32, #tpu.memory_space<vmem>>, vector<1x32x128xf32>
    %10 = vector.shape_cast %9 : vector<1x32x128xf32> to vector<32x128xf32>
    %c0_7 = arith.constant 0 : index
    %c0_8 = arith.constant 0 : index
    %11 = vector.load %arg3[%c0_7, %c0_8] : memref<32x128xi8, #tpu.memory_space<vmem>>, vector<32x128xi8>
    %12 = arith.extsi %11 : vector<32x128xi8> to vector<32x128xi32>
    %13 = arith.maximumf %6, %8 : vector<32x128xf32>
    %14 = arith.maximumf %13, %10 : vector<32x128xf32>
    %15 = arith.subf %6, %14 : vector<32x128xf32>
    %16 = math.exp %15 : vector<32x128xf32>
    %17 = arith.subf %8, %14 : vector<32x128xf32>
    %18 = math.exp %17 : vector<32x128xf32>
    %19 = arith.subf %10, %14 : vector<32x128xf32>
    %20 = math.exp %19 : vector<32x128xf32>
    %21 = arith.addf %16, %18 : vector<32x128xf32>
    %22 = arith.addf %21, %20 : vector<32x128xf32>
    %c1_i32_9 = arith.constant 1 : i32
    %23 = vector.broadcast %c1_i32_9 : i32 to vector<32x128xi32>
    %24 = arith.cmpi eq, %12, %23 : vector<32x128xi32>
    %25 = arith.select %24, %18, %20 : vector<32x128xi1>, vector<32x128xf32>
    %c0_i32_10 = arith.constant 0 : i32
    %26 = vector.broadcast %c0_i32_10 : i32 to vector<32x128xi32>
    %27 = arith.cmpi eq, %12, %26 : vector<32x128xi32>
    %28 = arith.select %27, %16, %25 : vector<32x128xi1>, vector<32x128xf32>
    %c0_i32_11 = arith.constant 0 : i32
    %29 = vector.broadcast %c0_i32_11 : i32 to vector<32x128xi32>
    %30 = arith.cmpi eq, %12, %29 : vector<32x128xi32>
    %cst = arith.constant 2.500000e-01 : f32
    %cst_12 = arith.constant 7.500000e-01 : f32
    %31 = vector.broadcast %cst : f32 to vector<32x128xf32>
    %32 = vector.broadcast %cst_12 : f32 to vector<32x128xf32>
    %33 = arith.select %30, %31, %32 : vector<32x128xi1>, vector<32x128xf32>
    %34 = arith.divf %28, %22 : vector<32x128xf32>
    %cst_13 = arith.constant 9.99999974E-5 : f32
    %cst_14 = arith.constant 1.000000e+00 : f32
    %35 = vector.broadcast %cst_13 : f32 to vector<32x128xf32>
    %36 = arith.maximumf %35, %34 : vector<32x128xf32>
    %37 = vector.broadcast %cst_14 : f32 to vector<32x128xf32>
    %38 = arith.minimumf %37, %36 : vector<32x128xf32>
    %39 = math.log %38 : vector<32x128xf32>
    %cst_15 = arith.constant 1.000000e+00 : f32
    %40 = vector.broadcast %cst_15 : f32 to vector<32x128xf32>
    %41 = arith.subf %40, %38 : vector<32x128xf32>
    %42 = arith.mulf %41, %41 : vector<32x128xf32>
    %43 = arith.mulf %33, %42 : vector<32x128xf32>
    %44 = arith.mulf %43, %39 : vector<32x128xf32>
    %cst_16 = arith.constant 0.000000e+00 : f32
    %45 = vector.broadcast %cst_16 : f32 to vector<32x128xf32>
    %46 = arith.subf %45, %44 : vector<32x128xf32>
    %c1_i32_17 = arith.constant 1 : i32
    %47 = arith.addi %1, %c1_i32_17 : i32
    %c4096_i32 = arith.constant 4096 : i32
    %48 = arith.muli %47, %c4096_i32 : i32
    %c8_i32 = arith.constant 8 : i32
    %49 = arith.cmpi sgt, %48, %c8_i32 : i32
    %true = arith.constant true
    %50 = arith.xori %49, %true : i1
    %51 = arith.extui %50 : i1 to i32
    %c0_i32_18 = arith.constant 0 : i32
    %52 = arith.cmpi ne, %51, %c0_i32_18 : i32
    scf.if %52 {
      %c0_20 = arith.constant 0 : index
      %c0_21 = arith.constant 0 : index
      %c0_22 = arith.constant 0 : index
      %55 = vector.load %arg4[%c0_20, %c0_21, %c0_22] : memref<1x8x128xf32, #tpu.memory_space<vmem>>, vector<1x8x128xf32>
      %56 = vector.shape_cast %55 : vector<1x8x128xf32> to vector<8x128xf32>
      %57 = vector.shape_cast %46 : vector<32x128xf32> to vector<4x8x128xf32>
      %cst_23 = arith.constant dense<0.000000e+00> : vector<8x128xf32>
      %58 = vector.multi_reduction <add>, %57, %cst_23 [0] : vector<4x8x128xf32> to vector<8x128xf32>
      %59 = arith.addf %56, %58 : vector<8x128xf32>
      %c0_24 = arith.constant 0 : index
      %c0_25 = arith.constant 0 : index
      %c0_26 = arith.constant 0 : index
      %60 = vector.load %arg4[%c0_24, %c0_25, %c0_26] : memref<1x8x128xf32, #tpu.memory_space<vmem>>, vector<1x8x128xf32>
      %61 = vector.shape_cast %60 : vector<1x8x128xf32> to vector<8x128xf32>
      %62 = vector.shape_cast %59 : vector<8x128xf32> to vector<1x8x128xf32>
      tpu.vector_store %arg4[%c0_24, %c0_25, %c0_26], %62 {strides = array<i32>} : memref<1x8x128xf32, #tpu.memory_space<vmem>>, vector<1x8x128xf32>,
    } else {
    }
    %53 = arith.extui %49 : i1 to i32
    %c0_i32_19 = arith.constant 0 : i32
    %54 = arith.cmpi ne, %53, %c0_i32_19 : i32
    scf.if %54 {
      %55 = tpu.iota {dimensions = array<i32: 0>} : vector<32x128xi32>
      %c128_i32 = arith.constant 128 : i32
      %56 = vector.broadcast %c128_i32 : i32 to vector<32x128xi32>
      %57 = arith.muli %55, %56 : vector<32x128xi32>
      %58 = tpu.iota {dimensions = array<i32: 1>} : vector<32x128xi32>
      %59 = arith.addi %57, %58 : vector<32x128xi32>
      %c4096_i32_20 = arith.constant 4096 : i32
      %60 = arith.muli %1, %c4096_i32_20 : i32
      %61 = vector.broadcast %60 : i32 to vector<32x128xi32>
      %62 = arith.addi %61, %59 : vector<32x128xi32>
      %c0_21 = arith.constant 0 : index
      %c0_22 = arith.constant 0 : index
      %c0_23 = arith.constant 0 : index
      %63 = vector.load %arg4[%c0_21, %c0_22, %c0_23] : memref<1x8x128xf32, #tpu.memory_space<vmem>>, vector<1x8x128xf32>
      %64 = vector.shape_cast %63 : vector<1x8x128xf32> to vector<8x128xf32>
      %c8_i32_24 = arith.constant 8 : i32
      %65 = vector.broadcast %c8_i32_24 : i32 to vector<32x128xi32>
      %66 = arith.cmpi slt, %62, %65 : vector<32x128xi32>
      %cst_25 = arith.constant 0.000000e+00 : f32
      %67 = vector.broadcast %cst_25 : f32 to vector<32x128xf32>
      %68 = arith.select %66, %46, %67 : vector<32x128xi1>, vector<32x128xf32>
      %69 = vector.shape_cast %68 : vector<32x128xf32> to vector<4x8x128xf32>
      %cst_26 = arith.constant dense<0.000000e+00> : vector<8x128xf32>
      %70 = vector.multi_reduction <add>, %69, %cst_26 [0] : vector<4x8x128xf32> to vector<8x128xf32>
      %71 = arith.addf %64, %70 : vector<8x128xf32>
      %c0_27 = arith.constant 0 : index
      %c0_28 = arith.constant 0 : index
      %c0_29 = arith.constant 0 : index
      %72 = vector.load %arg4[%c0_27, %c0_28, %c0_29] : memref<1x8x128xf32, #tpu.memory_space<vmem>>, vector<1x8x128xf32>
      %73 = vector.shape_cast %72 : vector<1x8x128xf32> to vector<8x128xf32>
      %74 = vector.shape_cast %71 : vector<8x128xf32> to vector<1x8x128xf32>
      tpu.vector_store %arg4[%c0_27, %c0_28, %c0_29], %74 {strides = array<i32>} : memref<1x8x128xf32, #tpu.memory_space<vmem>>, vector<1x8x128xf32>,
    } else {
    }
    return
  }
  func.func @transform_0(%arg0: i32, %arg1: i32) -> (i32, i32, i32) {
    %c1_i32 = arith.constant 1 : i32
    %0 = arith.muli %arg0, %c1_i32 : i32
    %1 = arith.addi %0, %arg1 : i32
    %c0_i32 = arith.constant 0 : i32
    %c0_i32_0 = arith.constant 0 : i32
    %c0_i32_1 = arith.constant 0 : i32
    return %c0_i32, %1, %c0_i32_0 : i32, i32, i32
  }
  func.func @transform_1(%arg0: i32, %arg1: i32) -> (i32, i32) {
    %c1_i32 = arith.constant 1 : i32
    %0 = arith.muli %arg0, %c1_i32 : i32
    %1 = arith.addi %0, %arg1 : i32
    %c0_i32 = arith.constant 0 : i32
    %c0_i32_0 = arith.constant 0 : i32
    return %1, %c0_i32 : i32, i32
  }
  func.func @transform_2(%arg0: i32, %arg1: i32) -> (i32, i32, i32) {
    %c0_i32 = arith.constant 0 : i32
    %c0_i32_0 = arith.constant 0 : i32
    %c0_i32_1 = arith.constant 0 : i32
    return %arg0, %c0_i32, %c0_i32_0 : i32, i32, i32
  }
}

</mosaic_0001>

<llo_original>
// kernel: tpu_custom_call.1
$region0: #{tpu_custom_call.1}
  #allocation0 [shape = 'u32[]', space=smem, size = 0x4, offset = 0x4, fixed_abs, tag = 'smem constant byte address 0x4 - core index']
  #allocation1 [shape = 'u32[144,128]{1,0:T(1,128)}', space=vmem, size = 0x12000, scoped, tag = 'internal scratch']
  %s0 = inlined_call_operand.hbm [shape: f32[3,32,128], index: 0, kind: input, shape index: {}]
  %s1 = inlined_call_operand.hbm [shape: s8[32,128], index: 1, kind: input, shape index: {}]
  %s2 = inlined_call_operand.hbm [shape: f32[1,8,128], index: 2, kind: output, shape index: {}]
  %s3 = sld [smem:[#allocation0]]
  $region38: #{tpu_custom_call.1} parent=0
    _
  %s5 = ssub.s32 1, %s3
  %s6 = scalar_select 0, %s5, %s3
  $region1: #{tpu_custom_call.1} parent=0
    #allocation2 [shape = 'u8[49152]{0}', space=vmem, size = 0xc000, scoped, tag = 'input window, operand 0, single buffered']
    #allocation3 [shape = 's32[1]{0}', space=sflag, size = 0x4, scoped, tag = 'scoped memory for tpu_custom_call.1']
    #allocation4 [shape = 's32[1]{0}', space=sflag, size = 0x4, scoped, tag = 'scoped memory for tpu_custom_call.1']
    #allocation5 [shape = 'u8[4096]{0}', space=vmem, size = 0x1000, scoped, tag = 'input window, operand 1, single buffered']
    #allocation6 [shape = 's32[1]{0}', space=sflag, size = 0x4, scoped, tag = 'scoped memory for tpu_custom_call.1']
    #allocation7 [shape = 'u8[4096]{0}', space=vmem, size = 0x1000, scoped, tag = 'output window, operand 0, single buffered']
    %7 = vsyncpa [#allocation3], 0
    %8 = vsyncpa [#allocation6], 0
    %9 = vsyncpa [#allocation4], 0
    // Predicated region
    $region2: #{tpu_custom_call.1} parent=1 // pred_check
      _
    $region3: #{tpu_custom_call.1} parent=1 // pred_check_branch
      %11 = sbr.rel (0) target = $region5
    $region4: #{tpu_custom_call.1} parent=1 // pred_region
      %s12 = sadd.s32 0, 0
      %s13 = smul.u32 4, %s12
      %s15 = ssub.s32 1536, 1536
      %16 = vsyncadd [#allocation3], %s15
      %s17 = smul.addr %s13, 128
      %s18 = scalar_lea.hbm %s0, %s17
      %s19 = sshll.u32 [#allocation2], 4
      %s20 = int_to_ptr.vmem [resolvable:$true] %s19
      %25 = dma.hbm_to_vmem [thread:$0]  %s18, 1536, %s20, [#allocation3], 128, 128, 8
    $region5: #{tpu_custom_call.1} parent=1 // pred_fallthru
      _
    // Predicated region
    $region6: #{tpu_custom_call.1} parent=1 // pred_check
      _
    $region7: #{tpu_custom_call.1} parent=1 // pred_check_branch
      %27 = sbr.rel (0) target = $region9
    $region8: #{tpu_custom_call.1} parent=1 // pred_region
      %s28 = sadd.s32 0, 0
      %s30 = ssub.s32 128, 128
      %31 = vsyncadd [#allocation6], %s30
      %s32 = smul.addr %s28, 128
      %s33 = scalar_lea.hbm %s1, %s32
      %s35 = sshll.u32 [#allocation5], 4
      %s36 = int_to_ptr.vmem [resolvable:$true] %s35
      %38 = dma.hbm_to_vmem [thread:$0]  %s33, 128, %s36, [#allocation6]
    $region9: #{tpu_custom_call.1} parent=1 // pred_fallthru
      _
    // Predicated region
    $region10: #{tpu_custom_call.1} parent=1 // pred_check
      _
    $region11: #{tpu_custom_call.1} parent=1 // pred_check_branch
      %40 = sbr.rel (0) target = $region13
    $region12: #{tpu_custom_call.1} parent=1 // pred_region
      %41 = dma.done [#allocation3], 1536
    $region13: #{tpu_custom_call.1} parent=1 // pred_fallthru
      _
    // Predicated region
    $region14: #{tpu_custom_call.1} parent=1 // pred_check
      _
    $region15: #{tpu_custom_call.1} parent=1 // pred_check_branch
      %43 = sbr.rel (0) target = $region17
    $region16: #{tpu_custom_call.1} parent=1 // pred_region
      %44 = dma.done [#allocation6], 128
    $region17: #{tpu_custom_call.1} parent=1 // pred_fallthru
      _
    %s45 = sadd.s32 0, 0
    %s46 = smul.u32 4, %s45
    %s47 = sadd.s32 0, 0
    %s48 = sadd.s32 0, 0
    %p49 = scmp.eq.s32.totalorder 0, 0
    // Predicated region
    $region18: #{tpu_custom_call.1} parent=1 // pred_check
      %p50 = pneg %p49
    $region19: #{tpu_custom_call.1} parent=1 // pred_check_branch
      %52 = sbr.rel (%p50) target = $region21
    $region20: #{tpu_custom_call.1} parent=1 // pred_region
      %53 = vst [vmem:[#allocation7] sm:$0xff] 0.0
    $region21: #{tpu_custom_call.1} parent=1 // pred_fallthru
      _
    %v54 = vld [vmem:[#allocation2] sm:$0xff]
    %v55 = vld [vmem:[#allocation2 + $0x8] sm:$0xff]
    %v56 = vld [vmem:[#allocation2 + $0x10] sm:$0xff]
    %v57 = vld [vmem:[#allocation2 + $0x18] sm:$0xff]
    %s58 = scalar_lea.vmem [#allocation2], 32
    %v59 = vld [vmem:[%s58] sm:$0xff]
    %v60 = vld [vmem:[%s58 + $0x8] sm:$0xff]
    %v61 = vld [vmem:[%s58 + $0x10] sm:$0xff]
    %v62 = vld [vmem:[%s58 + $0x18] sm:$0xff]
    %s63 = scalar_lea.vmem [#allocation2], 64
    %v64 = vld [vmem:[%s63] sm:$0xff]
    %v65 = vld [vmem:[%s63 + $0x8] sm:$0xff]
    %v66 = vld [vmem:[%s63 + $0x10] sm:$0xff]
    %v67 = vld [vmem:[%s63 + $0x18] sm:$0xff]
    %v68 = vld [vmem:[#allocation5] sm:$0xff]
    %v69 = vunpack.c.0.s8 %v68
    %v70 = vunpack.c.1.s8 %v68
    %v71 = vunpack.c.2.s8 %v68
    %v72 = vunpack.c.3.s8 %v68
    %v73 = vmax.f32 %v54, %v59
    %v74 = vmax.f32 %v55, %v60
    %v75 = vmax.f32 %v56, %v61
    %v76 = vmax.f32 %v57, %v62
    %v77 = vmax.f32 %v73, %v64
    %v78 = vmax.f32 %v74, %v65
    %v79 = vmax.f32 %v75, %v66
    %v80 = vmax.f32 %v76, %v67
    %v81 = vsub.f32 %v54, %v77
    %v82 = vsub.f32 %v55, %v78
    %v83 = vsub.f32 %v56, %v79
    %v84 = vsub.f32 %v57, %v80
    %v85 = vmul.f32 %v81, 1.442695
    %v86 = vpow.pop %v85
    %v87 = vmul.f32 %v82, 1.442695
    %v88 = vpow.pop %v87
    %v89 = vmul.f32 %v83, 1.442695
    %v90 = vpow.pop %v89
    %v91 = vmul.f32 %v84, 1.442695
    %v92 = vpow.pop %v91
    %v93 = vsub.f32 %v59, %v77
    %v94 = vsub.f32 %v60, %v78
    %v95 = vsub.f32 %v61, %v79
    %v96 = vsub.f32 %v62, %v80
    %v97 = vmul.f32 %v93, 1.442695
    %v98 = vpow.pop %v97
    %v99 = vmul.f32 %v94, 1.442695
    %v100 = vpow.pop %v99
    %v101 = vmul.f32 %v95, 1.442695
    %v102 = vpow.pop %v101
    %v103 = vmul.f32 %v96, 1.442695
    %v104 = vpow.pop %v103
    %v105 = vsub.f32 %v64, %v77
    %v106 = vsub.f32 %v65, %v78
    %v107 = vsub.f32 %v66, %v79
    %v108 = vsub.f32 %v67, %v80
    %v109 = vmul.f32 %v105, 1.442695
    %v110 = vpow.pop %v109
    %v111 = vmul.f32 %v106, 1.442695
    %v112 = vpow.pop %v111
    %v113 = vmul.f32 %v107, 1.442695
    %v114 = vpow.pop %v113
    %v115 = vmul.f32 %v108, 1.442695
    %v116 = vpow.pop %v115
    %v117 = vadd.f32 %v86, %v98
    %v118 = vadd.f32 %v88, %v100
    %v119 = vadd.f32 %v90, %v102
    %v120 = vadd.f32 %v92, %v104
    %v121 = vadd.f32 %v117, %v110
    %v122 = vadd.f32 %v118, %v112
    %v123 = vadd.f32 %v119, %v114
    %v124 = vadd.f32 %v120, %v116
    %vm125 = vcmp.eq.s32.totalorder %v69, 1
    %vm126 = vcmp.eq.s32.totalorder %v70, 1
    %vm127 = vcmp.eq.s32.totalorder %v71, 1
    %vm128 = vcmp.eq.s32.totalorder %v72, 1
    %v129 = vsel %vm125, %v98, %v110
    %v130 = vsel %vm126, %v100, %v112
    %v131 = vsel %vm127, %v102, %v114
    %v132 = vsel %vm128, %v104, %v116
    %vm133 = vcmp.eq.s32.totalorder %v69, 0
    %vm134 = vcmp.eq.s32.totalorder %v70, 0
    %vm135 = vcmp.eq.s32.totalorder %v71, 0
    %vm136 = vcmp.eq.s32.totalorder %v72, 0
    %v137 = vsel %vm133, %v86, %v129
    %v138 = vsel %vm134, %v88, %v130
    %v139 = vsel %vm135, %v90, %v131
    %v140 = vsel %vm136, %v92, %v132
    %v141 = vsel %vm133, 0.25, 0.75
    %v142 = vsel %vm134, 0.25, 0.75
    %v143 = vsel %vm135, 0.25, 0.75
    %v144 = vsel %vm136, 0.25, 0.75
    %v145 = vrcp.pop %v121
    %v146 = vmul.f32 %v137, %v145
    %v147 = vrcp.pop %v122
    %v148 = vmul.f32 %v138, %v147
    %v149 = vrcp.pop %v123
    %v150 = vmul.f32 %v139, %v149
    %v151 = vrcp.pop %v124
    %v152 = vmul.f32 %v140, %v151
    %v153 = vmax.f32 %v146, 0.0001
    %v154 = vmax.f32 %v148, 0.0001
    %v155 = vmax.f32 %v150, 0.0001
    %v156 = vmax.f32 %v152, 0.0001
    %v157 = vmin.f32 %v153, 1.0
    %v158 = vmin.f32 %v154, 1.0
    %v159 = vmin.f32 %v155, 1.0
    %v160 = vmin.f32 %v156, 1.0
    %v161 = vlog2.pop %v157
    %v162 = vmul.f32 %v161, 0.6931472
    %v163 = vlog2.pop %v158
    %v164 = vmul.f32 %v163, 0.6931472
    %v165 = vlog2.pop %v159
    %v166 = vmul.f32 %v165, 0.6931472
    %v167 = vlog2.pop %v160
    %v168 = vmul.f32 %v167, 0.6931472
    %v169 = vsub.f32 1.0, %v157
    %v170 = vsub.f32 1.0, %v158
    %v171 = vsub.f32 1.0, %v159
    %v172 = vsub.f32 1.0, %v160
    %v173 = vmul.f32 %v169, %v169
    %v174 = vmul.f32 %v170, %v170
    %v175 = vmul.f32 %v171, %v171
    %v176 = vmul.f32 %v172, %v172
    %v177 = vmul.f32 %v141, %v173
    %v178 = vmul.f32 %v142, %v174
    %v179 = vmul.f32 %v143, %v175
    %v180 = vmul.f32 %v144, %v176
    %v181 = vmul.f32 %v177, %v162
    %v182 = vmul.f32 %v178, %v164
    %v183 = vmul.f32 %v179, %v166
    %v184 = vmul.f32 %v180, %v168
    %v185 = vsub.f32 0.0, %v181
    %v186 = vsub.f32 0.0, %v182
    %v187 = vsub.f32 0.0, %v183
    %v188 = vsub.f32 0.0, %v184
    %s189 = sadd.s32 %s48, 1
    %s190 = smul.u32 %s189, 4096
    %p191 = scmp.gt.s32.totalorder %s190, 8
    %p192 = scmp.le.s32.totalorder %s190, 8
    // Predicated region
    $region22: #{tpu_custom_call.1} parent=1 // pred_check
      %p193 = pneg %p192
    $region23: #{tpu_custom_call.1} parent=1 // pred_check_branch
      %195 = sbr.rel (%p193) target = $region25
    $region24: #{tpu_custom_call.1} parent=1 // pred_region
      %v196 = vld [vmem:[#allocation7] sm:$0xff]
      %v197 = vadd.f32 %v185, %v186
      %v198 = vadd.f32 %v197, %v187
      %v199 = vadd.f32 %v198, %v188
      %v200 = vadd.f32 %v196, %v199
      %201 = vst [vmem:[#allocation7] sm:$0xff] %v200
    $region25: #{tpu_custom_call.1} parent=1 // pred_fallthru
      _
    // Predicated region
    $region26: #{tpu_custom_call.1} parent=1 // pred_check
      %p202 = pneg %p191
    $region27: #{tpu_custom_call.1} parent=1 // pred_check_branch
      %204 = sbr.rel (%p202) target = $region29
    $region28: #{tpu_custom_call.1} parent=1 // pred_region
      %v205 = vlaneseq
      %v206 = vshrl.u32 %v205, 7
      %v207 = vadd.s32 %v206, 8
      %v208 = vadd.s32 %v206, 16
      %v209 = vadd.s32 %v206, 24
      %v210 = vmul.u32 %v206, 128
      %v211 = vmul.u32 %v207, 128
      %v212 = vmul.u32 %v208, 128
      %v213 = vmul.u32 %v209, 128
      %v214 = vlaneseq
      %v215 = vand.u32 %v214, 127
      %v216 = vadd.s32 %v210, %v215
      %v217 = vadd.s32 %v211, %v215
      %v218 = vadd.s32 %v212, %v215
      %v219 = vadd.s32 %v213, %v215
      %s220 = smul.u32 %s48, 4096
      %v221 = vstv %s220
      %v222 = vadd.s32 %v221, %v216
      %v223 = vadd.s32 %v221, %v217
      %v224 = vadd.s32 %v221, %v218
      %v225 = vadd.s32 %v221, %v219
      %v226 = vld [vmem:[#allocation7] sm:$0xff]
      %vm227 = vcmp.lt.s32.totalorder %v222, 8
      %vm228 = vcmp.lt.s32.totalorder %v223, 8
      %vm229 = vcmp.lt.s32.totalorder %v224, 8
      %vm230 = vcmp.lt.s32.totalorder %v225, 8
      %v231 = vsel %vm227, %v185, 0.0
      %v232 = vsel %vm228, %v186, 0.0
      %v233 = vsel %vm229, %v187, 0.0
      %v234 = vsel %vm230, %v188, 0.0
      %v235 = vadd.f32 %v231, %v232
      %v236 = vadd.f32 %v235, %v233
      %v237 = vadd.f32 %v236, %v234
      %v238 = vadd.f32 %v226, %v237
      %239 = vst [vmem:[#allocation7] sm:$0xff] %v238
    $region29: #{tpu_custom_call.1} parent=1 // pred_fallthru
      _
    // Predicated region
    $region30: #{tpu_custom_call.1} parent=1 // pred_check
      _
    $region31: #{tpu_custom_call.1} parent=1 // pred_check_branch
      %241 = sbr.rel (0) target = $region33
    $region32: #{tpu_custom_call.1} parent=1 // pred_region
      %s243 = ssub.s32 128, 128
      %244 = vsyncadd [#allocation4], %s243
      %s246 = sshll.u32 [#allocation7], 4
      %s247 = int_to_ptr.vmem [resolvable:$true] %s246
      %249 = dma.vmem_to_hbm [thread:$0]  %s247, 128, %s2, [#allocation4]
    $region33: #{tpu_custom_call.1} parent=1 // pred_fallthru
      _
    // Predicated region
    $region34: #{tpu_custom_call.1} parent=1 // pred_check
      _
    $region35: #{tpu_custom_call.1} parent=1 // pred_check_branch
      %251 = sbr.rel (0) target = $region37
    $region36: #{tpu_custom_call.1} parent=1 // pred_region
      %252 = dma.done [#allocation4], 128
    $region37: #{tpu_custom_call.1} parent=1 // pred_fallthru
      _
    %253 = vsyncpa [#allocation3], 1
    %254 = vsyncpa [#allocation6], 1
    %255 = vsyncpa [#allocation4], 1

</llo_original>
